<compile_context>
chip_gen: v7x
topology: tpu7x:2x2x1
jax: 0.10.0
libtpu: 0.0.40
codegen_flags: <defaults>
</compile_context>

<pallas_src>
import math
import functools

import jax
import jax.numpy as jnp
from jax.experimental import pallas as pl
from jax.experimental.pallas import tpu as pltpu


_VMEM_LIMIT = 32 * 1024 * 1024     # explicit scoped-VMEM budget; safe on v5e/v6e/v7x
_STREAM_BUDGET = 4 * 1024 * 1024   # rough per-step stream budget for batch blocking


def _pick_batch_block(n, bytes_per_example, budget=_STREAM_BUDGET):
    """Batch elements per grid step; keep >=2 grid steps (v7x megacore) and fit VMEM."""
    for bb in (8, 4, 2):
        if n % bb == 0 and n // bb >= 2 and bb * bytes_per_example <= budget:
            return bb
    return 1


# ---------------------------------------------------------------------------
# Kernel 1: [fused prev-layer BN-affine+ReLU (+residual add)] -> Conv1d(k=3, same)
#           + bias [+ fused 1x1 skip conv] [+ emit fused input] + BN partial stats.
# Layout inside the kernel: (C, L) with C on sublanes, L on lanes.
# ---------------------------------------------------------------------------
def _conv3_kernel(*refs, nb, in_act, in_add, has_skip, emit_input):
    it = iter(refs)
    x_ref = next(it)                                  # (nb, Cin, L)
    if in_act:
        sc_ref = next(it)                             # (Cin, 1) f32 BN scale (prev layer)
        sh_ref = next(it)                             # (Cin, 1) f32 BN shift (prev layer)
    if in_add:
        add_ref = next(it)                            # (nb, Cin, L) residual to add
    w_ref = next(it)                                  # (3, Cout, Cin) conv taps
    b_ref = next(it)                                  # (Cout, 1) f32 conv bias
    if has_skip:
        wsk_ref = next(it)                            # (Csk, Cin) 1x1 skip weight
        bsk_ref = next(it)                            # (Csk, 1) f32 skip bias
    y_ref = next(it)                                  # (nb, Cout, L) pre-BN conv output
    stats_ref = next(it)                              # (1, Cout, 2) [sum, sum_sq] partial
    sp_ref = next(it) if has_skip else None           # (nb, Csk, L)
    emit_ref = next(it) if emit_input else None       # (nb, Cin, L) fused prologue output

    w_prev = w_ref[0]                                 # (Cout, Cin)
    w_cent = w_ref[1]
    w_next = w_ref[2]
    mm_dtype = w_cent.dtype
    cout = y_ref.shape[1]

    s_acc = jnp.zeros((cout, 1), jnp.float32)
    ss_acc = jnp.zeros((cout, 1), jnp.float32)

    for b in range(nb):                               # static, unrolled (nb is small)
        x = x_ref[b]                                  # (Cin, L), activation dtype
        if in_act:
            # Previous layer's BN-affine + ReLU, in the activation dtype
            # (bf16-native VPU math on v6e/v7x when act dtype is bf16).
            sc = sc_ref[...].astype(x.dtype)
            sh = sh_ref[...].astype(x.dtype)
            x = jnp.maximum(x * sc + sh, 0.0)
        if in_add:
            x = x + add_ref[b]                        # previous block's residual add
        if emit_input:
            emit_ref[b] = x.astype(emit_ref.dtype)    # materialize once (next identity skip)

        xm = x.astype(mm_dtype)
        cin, L = xm.shape
        # k=3 halo: one zero-padded copy + two static lane slices (zero padding is
        # applied AFTER the fused activation, matching PyTorch's conv zero padding).
        zcol = jnp.zeros((cin, 1), mm_dtype)
        xp = jnp.concatenate([zcol, xm, zcol], axis=1)            # (Cin, L+2)

        acc = jnp.dot(w_cent, xm, preferred_element_type=jnp.float32)
        acc = acc + jnp.dot(w_prev, xp[:, :L], preferred_element_type=jnp.float32)
        acc = acc + jnp.dot(w_next, xp[:, 2:], preferred_element_type=jnp.float32)
        y = acc + b_ref[...]                                       # (Cout, L) f32
        y_ref[b] = y.astype(y_ref.dtype)

        # BatchNorm partial statistics in f32 (reduced in the wrapper).
        s_acc = s_acc + jnp.sum(y, axis=1, keepdims=True)
        ss_acc = ss_acc + jnp.sum(y * y, axis=1, keepdims=True)

        if has_skip:
            # 1x1 residual-skip conv reuses the in-register activation (no extra read).
            sp = jnp.dot(wsk_ref[...], xm, preferred_element_type=jnp.float32)
            sp_ref[b] = (sp + bsk_ref[...]).astype(sp_ref.dtype)

    stats_ref[0] = jnp.concatenate([s_acc, ss_acc], axis=1)        # (Cout, 2)


# ---------------------------------------------------------------------------
# Kernel 2 (once per layer): BN-affine + ReLU + residual add.
# ---------------------------------------------------------------------------
def _epilogue_kernel(y_ref, sc_ref, sh_ref, add_ref, o_ref, *, nb):
    for b in range(nb):
        y = y_ref[b]                                  # (C, L), activation dtype
        sc = sc_ref[...].astype(y.dtype)
        sh = sh_ref[...].astype(y.dtype)
        a = jnp.maximum(y * sc + sh, 0.0)
        o_ref[b] = (a + add_ref[b]).astype(o_ref.dtype)


# ---------------------------------------------------------------------------
# pallas_call wrappers
# ---------------------------------------------------------------------------
def conv3_call(x, w3, b, in_scale=None, in_shift=None, skip_add=None,
               w_skip=None, b_skip=None, *, emit_input=False, act_dtype, mm_dtype):
    """x: (N, Cin, L) NCL.  w3: (3, Cout, Cin).  Returns (y, stats[, sp][, emit])."""
    N, Cin, L = x.shape
    Cout = w3.shape[1]
    in_act = in_scale is not None
    in_add = skip_add is not None
    has_skip = w_skip is not None

    itemsize = jnp.dtype(act_dtype).itemsize
    bb = _pick_batch_block(N, (2 * Cin + 2 * Cout) * L * itemsize * 2)
    nsteps = N // bb

    args = [x]
    in_specs = [pl.BlockSpec((bb, Cin, L), lambda i: (i, 0, 0))]
    if in_act:
        args += [in_scale.reshape(Cin, 1).astype(jnp.float32),
                 in_shift.reshape(Cin, 1).astype(jnp.float32)]
        in_specs += [pl.BlockSpec((Cin, 1), lambda i: (0, 0)),
                     pl.BlockSpec((Cin, 1), lambda i: (0, 0))]
    if in_add:
        args.append(skip_add)
        in_specs.append(pl.BlockSpec((bb, Cin, L), lambda i: (i, 0, 0)))
    args += [w3.astype(mm_dtype), b.reshape(Cout, 1).astype(jnp.float32)]
    in_specs += [pl.BlockSpec((3, Cout, Cin), lambda i: (0, 0, 0)),
                 pl.BlockSpec((Cout, 1), lambda i: (0, 0))]
    if has_skip:
        Csk = w_skip.shape[0]
        args += [w_skip.astype(mm_dtype), b_skip.reshape(Csk, 1).astype(jnp.float32)]
        in_specs += [pl.BlockSpec((Csk, Cin), lambda i: (0, 0)),
                     pl.BlockSpec((Csk, 1), lambda i: (0, 0))]

    out_shape = [jax.ShapeDtypeStruct((N, Cout, L), act_dtype),
                 jax.ShapeDtypeStruct((nsteps, Cout, 2), jnp.float32)]
    out_specs = [pl.BlockSpec((bb, Cout, L), lambda i: (i, 0, 0)),
                 pl.BlockSpec((1, Cout, 2), lambda i: (i, 0, 0))]
    if has_skip:
        Csk = w_skip.shape[0]
        out_shape.append(jax.ShapeDtypeStruct((N, Csk, L), act_dtype))
        out_specs.append(pl.BlockSpec((bb, Csk, L), lambda i: (i, 0, 0)))
    if emit_input:
        out_shape.append(jax.ShapeDtypeStruct((N, Cin, L), act_dtype))
        out_specs.append(pl.BlockSpec((bb, Cin, L), lambda i: (i, 0, 0)))

    kernel = functools.partial(_conv3_kernel, nb=bb, in_act=in_act, in_add=in_add,
                               has_skip=has_skip, emit_input=emit_input)
    return pl.pallas_call(
        kernel,
        out_shape=tuple(out_shape),
        grid=(nsteps,),
        in_specs=in_specs,
        out_specs=tuple(out_specs),
        compiler_params=pltpu.CompilerParams(
            dimension_semantics=("parallel",),
            vmem_limit_bytes=_VMEM_LIMIT),
    )(*args)


def epilogue_call(y, scale, shift, skip, *, act_dtype):
    """relu(y*scale + shift) + skip, once per layer (pre-pool)."""
    N, C, L = y.shape
    itemsize = jnp.dtype(act_dtype).itemsize
    bb = _pick_batch_block(N, 3 * C * L * itemsize * 2)
    nsteps = N // bb
    kernel = functools.partial(_epilogue_kernel, nb=bb)
    return pl.pallas_call(
        kernel,
        out_shape=jax.ShapeDtypeStruct((N, C, L), act_dtype),
        grid=(nsteps,),
        in_specs=[pl.BlockSpec((bb, C, L), lambda i: (i, 0, 0)),
                  pl.BlockSpec((C, 1), lambda i: (0, 0)),
                  pl.BlockSpec((C, 1), lambda i: (0, 0)),
                  pl.BlockSpec((bb, C, L), lambda i: (i, 0, 0))],
        out_specs=pl.BlockSpec((bb, C, L), lambda i: (i, 0, 0)),
        compiler_params=pltpu.CompilerParams(
            dimension_semantics=("parallel",),
            vmem_limit_bytes=_VMEM_LIMIT),
    )(y, scale.reshape(C, 1).astype(jnp.float32),
      shift.reshape(C, 1).astype(jnp.float32), skip)


# ---------------------------------------------------------------------------
# Glue (tiny per-channel math, weight plumbing) in plain JAX.
# ---------------------------------------------------------------------------
def _w3(w):
    # (3, Cin, Cout) -> (3, Cout, Cin) for (Cout,Cin) @ (Cin,L) per-tap matmuls.
    return jnp.transpose(w, (0, 2, 1))


def _w1(w):
    # (Cin, Cout) -> (Cout, Cin)
    return jnp.transpose(w, (1, 0))


def bn_affine(stats_partials, gamma, beta, count, eps=1e-5):
    """Fold training-mode batch stats into a per-channel scale/shift (f32)."""
    s = jnp.sum(stats_partials, axis=0)               # (C, 2)
    mean = s[:, 0] / count
    var = jnp.maximum(s[:, 1] / count - mean * mean, 0.0)   # biased var, clamped
    scale = gamma / jnp.sqrt(var + eps)
    shift = beta - mean * scale
    return scale, shift


def _layer(inp, pA, pB, *, act_dtype, mm_dtype, eps=1e-5):
    """Residual_Block(double) -> Residual_Block -> AvgPool1d(2) for one Generator layer.

    `inp` is {"act": x} (materialized NCL activation) or
    {"pre": y, "scale": s, "shift": sh} (previous conv pre-BN output + fused BN affine).
    """
    kw = dict(act_dtype=act_dtype, mm_dtype=mm_dtype)
    (w1A, b1A, g1A, be1A), (w2A, b2A, g2A, be2A), (w3A, b3A, g3A, be3A) = pA["convs"]
    (w1B, b1B, g1B, be1B), (w2B, b2B, g2B, be2B), (w3B, b3B, g3B, be3B) = pB["convs"]
    wskA, bskA = pA["skip"]

    if "act" in inp:
        x_in, sc_in, sh_in = inp["act"], None, None
    else:
        x_in, sc_in, sh_in = inp["pre"], inp["scale"], inp["shift"]
    N, _, L = x_in.shape
    cnt = N * L

    # --- Residual_Block A (doubling). conv1 also computes the 1x1 skip on the
    #     (fused) block input.
    y1A, st1A, spA = conv3_call(x_in, _w3(w1A), b1A, sc_in, sh_in,
                                w_skip=_w1(wskA), b_skip=bskA, **kw)
    s1A, sh1A = bn_affine(st1A, g1A, be1A, cnt, eps)
    y2A, st2A = conv3_call(y1A, _w3(w2A), b2A, s1A, sh1A, **kw)
    s2A, sh2A = bn_affine(st2A, g2A, be2A, cnt, eps)
    y3A, st3A = conv3_call(y2A, _w3(w3A), b3A, s2A, sh2A, **kw)
    s3A, sh3A = bn_affine(st3A, g3A, be3A, cnt, eps)

    # --- Residual_Block B (identity skip). Block A's epilogue (BN + ReLU + residual
    #     add) is fused into conv1's prologue; the fused activation (= block B's
    #     identity skip) is emitted once from the same kernel.
    y1B, st1B, actA = conv3_call(y3A, _w3(w1B), b1B, s3A, sh3A, skip_add=spA,
                                 emit_input=True, **kw)
    s1B, sh1B = bn_affine(st1B, g1B, be1B, cnt, eps)
    y2B, st2B = conv3_call(y1B, _w3(w2B), b2B, s1B, sh1B, **kw)
    s2B, sh2B = bn_affine(st2B, g2B, be2B, cnt, eps)
    y3B, st3B = conv3_call(y2B, _w3(w3B), b3B, s2B, sh2B, **kw)
    s3B, sh3B = bn_affine(st3B, g3B, be3B, cnt, eps)

    out = epilogue_call(y3B, s3B, sh3B, actA, act_dtype=act_dtype)

    # AvgPool1d(kernel_size=2): bandwidth-only reshape-mean in XLA.
    # TODO(synk): fuse into the epilogue kernel once stride-2 lane compaction
    # (lane-strided value slicing) is validated in this Mosaic version.
    NN, C, LL = out.shape
    return out.reshape(NN, C, LL // 2, 2).mean(axis=-1).astype(act_dtype)


def generator_forward(features, noise, params, *, act_dtype=jnp.float32,
                      mm_dtype=jnp.float32, eps=1e-5):
    """features/noise: (N, C, L) NCL (PyTorch layout).  Returns NCL.

    For production, prefer act_dtype=mm_dtype=bfloat16 (halves HBM traffic;
    especially valuable on v5e) — stats/accumulation stay f32 either way.
    """
    x = jnp.concatenate([features, noise], axis=1).astype(act_dtype)   # (N, 9, L)
    N, _, L = x.shape
    kw = dict(act_dtype=act_dtype, mm_dtype=mm_dtype)

    # Bottleneck conv; its BN + ReLU is fused into the first conv of layer_1.
    wb, bconv, gb, beb = params["bottleneck"]
    yb, stb = conv3_call(x, _w3(wb), bconv, **kw)
    sb, shb = bn_affine(stb, gb, beb, N * L, eps)
    carry = {"pre": yb, "scale": sb, "shift": shb}

    for (pA, pB) in params["layers"]:
        out = _layer(carry, pA, pB, eps=eps, **kw)
        carry = {"act": out}

    # TODO(synk): for very long sequences add an L-tile grid axis with halo handling;
    # whole-(C, L) per-example blocks are ample for this model's channel counts.
    return carry["act"]


# ---------------------------------------------------------------------------
# Deterministic parameter init (PyTorch-default-style uniform bounds).
# ---------------------------------------------------------------------------
def _conv_bn_init(key, cin, cout, k):
    k1, k2 = jax.random.split(key)
    bound = 1.0 / math.sqrt(cin * k)
    w = jax.random.uniform(k1, (k, cin, cout), jnp.float32, -bound, bound)
    b = jax.random.uniform(k2, (cout,), jnp.float32, -bound, bound)
    return (w, b, jnp.ones((cout,), jnp.float32), jnp.zeros((cout,), jnp.float32))


def _rb_init(key, cin, cout, double):
    keys = jax.random.split(key, 4)
    p = {"convs": [_conv_bn_init(keys[0], cin, cout, 3),
                   _conv_bn_init(keys[1], cout, cout, 3),
                   _conv_bn_init(keys[2], cout, cout, 3)]}
    if double:
        k1, k2 = jax.random.split(keys[3])
        bound = 1.0 / math.sqrt(cin)
        p["skip"] = (jax.random.uniform(k1, (cin, cout), jnp.float32, -bound, bound),
                     jax.random.uniform(k2, (cout,), jnp.float32, -bound, bound))
    return p


def init_generator_params(key):
    kb, k1, k2, k3, k4 = jax.random.split(key, 5)
    params = {"bottleneck": _conv_bn_init(kb, 9, 8, 3), "layers": []}
    cin = 8
    for kl in (k1, k2, k3, k4):
        cout = 2 * cin
        ka, kb2 = jax.random.split(kl)
        params["layers"].append((_rb_init(ka, cin, cout, True),
                                 _rb_init(kb2, cout, cout, False)))
        cin = cout
    return params


# ---------------------------------------------------------------------------
# Pure-JAX reference (PyTorch semantics, train-mode BN) for correctness check.
# ---------------------------------------------------------------------------
def _ref_conv_bn_relu(x, w, b, gamma, beta, eps=1e-5):
    K = w.shape[0]
    pad = (K - 1) // 2
    w_oih = jnp.transpose(w, (2, 1, 0))
    y = jax.lax.conv_general_dilated(x, w_oih, (1,), [(pad, pad)],
                                     dimension_numbers=("NCH", "OIH", "NCH"))
    y = y + b[None, :, None]
    mean = jnp.mean(y, axis=(0, 2), keepdims=True)
    var = jnp.mean((y - mean) ** 2, axis=(0, 2), keepdims=True)
    y = (y - mean) / jnp.sqrt(var + eps) * gamma[None, :, None] + beta[None, :, None]
    return jnp.maximum(y, 0.0)


def _ref_residual_block(x, p, double):
    net = x
    for (w, b, g, be) in p["convs"]:
        net = _ref_conv_bn_relu(net, w, b, g, be)
    if double:
        wsk, bsk = p["skip"]
        sp = jnp.einsum("ncl,co->nol", x, wsk) + bsk[None, :, None]
    else:
        sp = x
    return net + sp


def ref_generator(features, noise, params):
    x = jnp.concatenate([features, noise], axis=1)
    x = _ref_conv_bn_relu(x, *params["bottleneck"])
    for (pA, pB) in params["layers"]:
        x = _ref_residual_block(x, pA, True)
        x = _ref_residual_block(x, pB, False)
        N, C, L = x.shape
        x = x.reshape(N, C, L // 2, 2).mean(axis=-1)
    return x


if __name__ == "__main__":
    key = jax.random.PRNGKey(0)
    kp, kf, kn = jax.random.split(key, 3)

    N, L = 2, 16
    C_feat, C_noise = 6, 3                      # concat -> 9 channels (BasicConvBlock(9, 8))
    params = init_generator_params(kp)
    features = jax.random.normal(kf, (N, C_feat, L), jnp.float32)
    noise = jax.random.normal(kn, (N, C_noise, L), jnp.float32)

    # f32 path (all chips) — checked against the pure-JAX reference.
    out = generator_forward(features, noise, params)
    out = jax.block_until_ready(out)
    ref = ref_generator(features, noise, params)
    assert out.shape == (N, 128, L // 16), out.shape
    assert jnp.allclose(out, ref, rtol=1e-3, atol=1e-3), \
        float(jnp.max(jnp.abs(out - ref)))

    # bf16 activation / MXU path (recommended for v5e/v6e/v7x production runs).
    # Stats and accumulation stay f32; sanity-checked only (bf16 rounding).
    out_bf16 = generator_forward(features, noise, params,
                                 act_dtype=jnp.bfloat16, mm_dtype=jnp.bfloat16)
    out_bf16 = jax.block_until_ready(out_bf16)
    assert out_bf16.shape == (N, 128, L // 16)
    assert bool(jnp.all(jnp.isfinite(out_bf16.astype(jnp.float32))))

    print("KERNEL_OK")
</pallas_src>

<mosaic_0001>
module attributes {stable_mosaic.version = 11 : i64} {
  func.func @_conv3_kernel(%arg0: i32, %arg1: memref<1x9x16xf32, #tpu.memory_space<vmem>>, %arg2: memref<3x8x9xf32, #tpu.memory_space<vmem>>, %arg3: memref<8x1xf32, #tpu.memory_space<vmem>>, %arg4: memref<1x8x16xf32, #tpu.memory_space<vmem>>, %arg5: memref<1x8x2xf32, #tpu.memory_space<vmem>>) attributes {dimension_semantics = [#tpu.dimension_semantics<parallel>], iteration_bounds = array<i64: 2>, scalar_prefetch = 0 : i64, scratch_operands = 0 : i64, tpu.core_type = #tpu.core_type<tc>, window_params = [{transform_indices = @transform_0, window_bounds = array<i64: 1, 9, 16>}, {pipeline_mode = #tpu.pipeline_mode<synchronous>, transform_indices = @transform_1, window_bounds = array<i64: 3, 8, 9>}, {pipeline_mode = #tpu.pipeline_mode<synchronous>, transform_indices = @transform_2, window_bounds = array<i64: 8, 1>}, {transform_indices = @transform_3, window_bounds = array<i64: 1, 8, 16>}, {transform_indices = @transform_4, window_bounds = array<i64: 1, 8, 2>}]} {
    %c0 = arith.constant 0 : index
    %c0_0 = arith.constant 0 : index
    %c0_1 = arith.constant 0 : index
    %0 = vector.load %arg2[%c0, %c0_0, %c0_1] : memref<3x8x9xf32, #tpu.memory_space<vmem>>, vector<1x8x9xf32>
    %1 = vector.shape_cast %0 : vector<1x8x9xf32> to vector<8x9xf32>
    %c1 = arith.constant 1 : index
    %c0_2 = arith.constant 0 : index
    %c0_3 = arith.constant 0 : index
    %2 = vector.load %arg2[%c1, %c0_2, %c0_3] : memref<3x8x9xf32, #tpu.memory_space<vmem>>, vector<1x8x9xf32>
    %3 = vector.shape_cast %2 : vector<1x8x9xf32> to vector<8x9xf32>
    %c2 = arith.constant 2 : index
    %c0_4 = arith.constant 0 : index
    %c0_5 = arith.constant 0 : index
    %4 = vector.load %arg2[%c2, %c0_4, %c0_5] : memref<3x8x9xf32, #tpu.memory_space<vmem>>, vector<1x8x9xf32>
    %5 = vector.shape_cast %4 : vector<1x8x9xf32> to vector<8x9xf32>
    %cst = arith.constant 0.000000e+00 : f32
    %6 = vector.broadcast %cst : f32 to vector<8x1xf32>
    %cst_6 = arith.constant 0.000000e+00 : f32
    %7 = vector.broadcast %cst_6 : f32 to vector<8x1xf32>
    %c0_7 = arith.constant 0 : index
    %c0_8 = arith.constant 0 : index
    %c0_9 = arith.constant 0 : index
    %8 = vector.load %arg1[%c0_7, %c0_8, %c0_9] : memref<1x9x16xf32, #tpu.memory_space<vmem>>, vector<1x9x16xf32>
    %9 = vector.shape_cast %8 : vector<1x9x16xf32> to vector<9x16xf32>
    %cst_10 = arith.constant 0.000000e+00 : f32
    %10 = vector.broadcast %cst_10 : f32 to vector<9x1xf32>
    %11 = tpu.concatenate %10, %9, %10 in 1 : vector<9x1xf32>, vector<9x16xf32>, vector<9x1xf32> -> vector<9x18xf32>
    %cst_11 = arith.constant dense<0.000000e+00> : vector<8x16xf32>
    %12 = tpu.matmul %3, %9, %cst_11 {dimension_numbers = #tpu.dot_dimension_numbers<[1], [0], [0], [1], [0, 0, 1, 1], [], []>} : vector<8x9xf32>, vector<9x16xf32>, vector<8x16xf32> -> vector<8x16xf32>
    %13 = vector.extract_strided_slice %11 {offsets = [0, 0], sizes = [9, 16], strides = [1, 1]} : vector<9x18xf32> to vector<9x16xf32>
    %cst_12 = arith.constant dense<0.000000e+00> : vector<8x16xf32>
    %14 = tpu.matmul %1, %13, %cst_12 {dimension_numbers = #tpu.dot_dimension_numbers<[1], [0], [0], [1], [0, 0, 1, 1], [], []>} : vector<8x9xf32>, vector<9x16xf32>, vector<8x16xf32> -> vector<8x16xf32>
    %15 = arith.addf %12, %14 : vector<8x16xf32>
    %16 = vector.extract_strided_slice %11 {offsets = [0, 2], sizes = [9, 16], strides = [1, 1]} : vector<9x18xf32> to vector<9x16xf32>
    %cst_13 = arith.constant dense<0.000000e+00> : vector<8x16xf32>
    %17 = tpu.matmul %5, %16, %cst_13 {dimension_numbers = #tpu.dot_dimension_numbers<[1], [0], [0], [1], [0, 0, 1, 1], [], []>} : vector<8x9xf32>, vector<9x16xf32>, vector<8x16xf32> -> vector<8x16xf32>
    %18 = arith.addf %15, %17 : vector<8x16xf32>
    %c0_14 = arith.constant 0 : index
    %c0_15 = arith.constant 0 : index
    %19 = vector.load %arg3[%c0_14, %c0_15] : memref<8x1xf32, #tpu.memory_space<vmem>>, vector<8x1xf32>
    %20 = vector.broadcast %19 : vector<8x1xf32> to vector<8x16xf32>
    %21 = arith.addf %18, %20 : vector<8x16xf32>
    %c0_16 = arith.constant 0 : index
    %c0_17 = arith.constant 0 : index
    %c0_18 = arith.constant 0 : index
    %22 = vector.load %arg4[%c0_16, %c0_17, %c0_18] : memref<1x8x16xf32, #tpu.memory_space<vmem>>, vector<1x8x16xf32>
    %23 = vector.shape_cast %22 : vector<1x8x16xf32> to vector<8x16xf32>
    %24 = vector.shape_cast %21 : vector<8x16xf32> to vector<1x8x16xf32>
    tpu.vector_store %arg4[%c0_16, %c0_17, %c0_18], %24 {strides = array<i32>} : memref<1x8x16xf32, #tpu.memory_space<vmem>>, vector<1x8x16xf32>,
    %cst_19 = arith.constant dense<0.000000e+00> : vector<8xf32>
    %25 = vector.multi_reduction <add>, %21, %cst_19 [1] : vector<8x16xf32> to vector<8xf32>
    %26 = vector.shape_cast %25 : vector<8xf32> to vector<8x1xf32>
    %27 = arith.addf %6, %26 : vector<8x1xf32>
    %28 = arith.mulf %21, %21 : vector<8x16xf32>
    %cst_20 = arith.constant dense<0.000000e+00> : vector<8xf32>
    %29 = vector.multi_reduction <add>, %28, %cst_20 [1] : vector<8x16xf32> to vector<8xf32>
    %30 = vector.shape_cast %29 : vector<8xf32> to vector<8x1xf32>
    %31 = arith.addf %7, %30 : vector<8x1xf32>
    %32 = tpu.concatenate %27, %31 in 1 : vector<8x1xf32>, vector<8x1xf32> -> vector<8x2xf32>
    %c0_21 = arith.constant 0 : index
    %c0_22 = arith.constant 0 : index
    %c0_23 = arith.constant 0 : index
    %33 = vector.load %arg5[%c0_21, %c0_22, %c0_23] : memref<1x8x2xf32, #tpu.memory_space<vmem>>, vector<1x8x2xf32>
    %34 = vector.shape_cast %33 : vector<1x8x2xf32> to vector<8x2xf32>
    %35 = vector.shape_cast %32 : vector<8x2xf32> to vector<1x8x2xf32>
    tpu.vector_store %arg5[%c0_21, %c0_22, %c0_23], %35 {strides = array<i32>} : memref<1x8x2xf32, #tpu.memory_space<vmem>>, vector<1x8x2xf32>,
    return
  }
  func.func @transform_0(%arg0: i32) -> (i32, i32, i32) {
    %c0_i32 = arith.constant 0 : i32
    %c0_i32_0 = arith.constant 0 : i32
    %c0_i32_1 = arith.constant 0 : i32
    return %arg0, %c0_i32, %c0_i32_0 : i32, i32, i32
  }
  func.func @transform_1(%arg0: i32) -> (i32, i32, i32) {
    %c0_i32 = arith.constant 0 : i32
    %c0_i32_0 = arith.constant 0 : i32
    %c0_i32_1 = arith.constant 0 : i32
    %c0_i32_2 = arith.constant 0 : i32
    return %c0_i32, %c0_i32_0, %c0_i32_1 : i32, i32, i32
  }
  func.func @transform_2(%arg0: i32) -> (i32, i32) {
    %c0_i32 = arith.constant 0 : i32
    %c0_i32_0 = arith.constant 0 : i32
    %c0_i32_1 = arith.constant 0 : i32
    return %c0_i32, %c0_i32_0 : i32, i32
  }
  func.func @transform_3(%arg0: i32) -> (i32, i32, i32) {
    %c0_i32 = arith.constant 0 : i32
    %c0_i32_0 = arith.constant 0 : i32
    %c0_i32_1 = arith.constant 0 : i32
    return %arg0, %c0_i32, %c0_i32_0 : i32, i32, i32
  }
  func.func @transform_4(%arg0: i32) -> (i32, i32, i32) {
    %c0_i32 = arith.constant 0 : i32
    %c0_i32_0 = arith.constant 0 : i32
    %c0_i32_1 = arith.constant 0 : i32
    return %arg0, %c0_i32, %c0_i32_0 : i32, i32, i32
  }
}

</mosaic_0001>

<llo_original>
// kernel: tpu_custom_call.1
$region0: #{tpu_custom_call.1}
  #allocation0 [shape = 'u32[]', space=smem, size = 0x4, offset = 0x4, fixed_abs, tag = 'smem constant byte address 0x4 - core index']
  #allocation1 [shape = 'u32[144,128]{1,0:T(1,128)}', space=vmem, size = 0x12000, scoped, tag = 'internal scratch']
  %s0 = inlined_call_operand.vmem [shape: f32[2,9,16], index: 0, kind: input, shape index: {}]
  %s1 = inlined_call_operand.vmem [shape: f32[3,8,9], index: 1, kind: input, shape index: {}]
  %s2 = inlined_call_operand.vmem [shape: f32[8,1], index: 2, kind: input, shape index: {}]
  %s3 = inlined_call_operand.hbm [shape: f32[2,8,16], index: 3, kind: output, shape index: {0}]
  %s4 = inlined_call_operand.vmem [shape: f32[2,8,2], index: 4, kind: output, shape index: {1}]
  %5 = xla_tuple %s3, %s4
  %s6 = sld [smem:[#allocation0]]
  $region53: #{tpu_custom_call.1} parent=0
    _
  %s8 = ssub.s32 1, %s6
  %s9 = scalar_select 0, %s8, %s6
  $region1: #{tpu_custom_call.1} parent=0
    #allocation2 [shape = 'u8[8192]{0}', space=vmem, size = 0x2000, scoped, tag = 'output window, operand 0']
    #allocation3 [shape = 's32[2]{0}', space=sflag, size = 0x8, scoped, tag = 'scoped memory for tpu_custom_call.1']
    %10 = vsyncpa [#allocation3], 0
    %s11 = scalar_lea.sflag [#allocation3], 1
    %12 = vsyncpa %s11, 0
    loop: start=0, step=1, limit=4
    $region2: #{tpu_custom_call.1} parent=1 // loop_pre_header
      _
    $region3: #{tpu_custom_call.1} parent=1 // loop_header
      %s14 = sphi 0, %s18
      %p15 = scmp.ge.s32.totalorder %s14, 4
      %s24 = sphi 0, %s26
      %s27 = sphi 0, %s24
      %s28 = sphi 0, %s27
      %s44 = sphi 0, %s28
      %s48 = sphi 0, %s48
      %s50 = sphi 0, %s48
      %s51 = sphi 0, %s50
      %s65 = sphi 0, %s51
      %s69 = sphi 0, %s69
      %s71 = sphi 0, %s69
      %s72 = sphi 0, %s71
      %s86 = sphi 0, %s72
      %s92 = sphi 0, %s94
      %s95 = sphi 0, %s92
      %s96 = sphi 0, %s95
      %s112 = sphi 0, %s96
      %s118 = sphi 0, %s120
      %s121 = sphi 0, %s118
      %s122 = sphi 0, %s121
      %s138 = sphi 0, %s122
    $region4: #{tpu_custom_call.1} parent=1 // loop_header_branch
      %17 = sbr.rel (%p15) target = $region8
    $region5: #{tpu_custom_call.1} parent=1 // loop_body
      %s19 = ssub.s32 %s14, 1
      %s20 = ssub.s32 %s14, 2
      %s21 = sadd.s32 %s14, 1
      %s22 = ssub.s32 %s14, %s21
      %p23 = scmp.eq.s32.totalorder %s22, 0
      %s25 = sadd.s32 %s24, 1
      %s26 = scalar_select %p23, %s24, %s25
      %p29 = pneg %p23
      %p30 = scmp.eq.s32.totalorder %s14, 1
      %p31 = por %p29, %p30
      %p32 = scmp.ne.s32.totalorder %s24, %s27
      %p33 = scmp.eq.s32.totalorder %s14, 0
      %p34 = por %p32, %p33
      %p35 = scmp.ne.s32.totalorder %s24, %s27
      %p36 = scmp.eq.s32.totalorder %s19, 1
      %p37 = por %p35, %p36
      %p38 = scmp.ne.s32.totalorder %s27, %s28
      %p39 = scmp.eq.s32.totalorder %s19, 0
      %p40 = por %p38, %p39
      %p41 = scmp.ne.s32.totalorder %s27, %s28
      %p42 = scmp.eq.s32.totalorder %s20, 1
      %p43 = por %p41, %p42
      %p45 = scmp.ne.s32.totalorder %s28, %s44
      %p46 = scmp.eq.s32.totalorder %s20, 0
      %p47 = por %p45, %p46
      %s49 = sadd.s32 %s48, 1
      %p52 = scmp.eq.s32.totalorder %s14, 1
      %p53 = scmp.ne.s32.totalorder %s48, %s50
      %p54 = scmp.eq.s32.totalorder %s14, 0
      %p55 = por %p53, %p54
      %p56 = scmp.ne.s32.totalorder %s48, %s50
      %p57 = scmp.eq.s32.totalorder %s19, 1
      %p58 = por %p56, %p57
      %p59 = scmp.ne.s32.totalorder %s50, %s51
      %p60 = scmp.eq.s32.totalorder %s19, 0
      %p61 = por %p59, %p60
      %p62 = scmp.ne.s32.totalorder %s50, %s51
      %p63 = scmp.eq.s32.totalorder %s20, 1
      %p64 = por %p62, %p63
      %p66 = scmp.ne.s32.totalorder %s51, %s65
      %p67 = scmp.eq.s32.totalorder %s20, 0
      %p68 = por %p66, %p67
      %s70 = sadd.s32 %s69, 1
      %p73 = scmp.eq.s32.totalorder %s14, 1
      %p74 = scmp.ne.s32.totalorder %s69, %s71
      %p75 = scmp.eq.s32.totalorder %s14, 0
      %p76 = por %p74, %p75
      %p77 = scmp.ne.s32.totalorder %s69, %s71
      %p78 = scmp.eq.s32.totalorder %s19, 1
      %p79 = por %p77, %p78
      %p80 = scmp.ne.s32.totalorder %s71, %s72
      %p81 = scmp.eq.s32.totalorder %s19, 0
      %p82 = por %p80, %p81
      %p83 = scmp.ne.s32.totalorder %s71, %s72
      %p84 = scmp.eq.s32.totalorder %s20, 1
      %p85 = por %p83, %p84
      %p87 = scmp.ne.s32.totalorder %s72, %s86
      %p88 = scmp.eq.s32.totalorder %s20, 0
      %p89 = por %p87, %p88
      %s90 = ssub.s32 %s14, %s21
      %p91 = scmp.eq.s32.totalorder %s90, 0
      %s93 = sadd.s32 %s92, 1
      %s94 = scalar_select %p91, %s92, %s93
      %p97 = pneg %p91
      %p98 = scmp.eq.s32.totalorder %s14, 1
      %p99 = por %p97, %p98
      %p100 = scmp.ne.s32.totalorder %s92, %s95
      %p101 = scmp.eq.s32.totalorder %s14, 0
      %p102 = por %p100, %p101
      %p103 = scmp.ne.s32.totalorder %s92, %s95
      %p104 = scmp.eq.s32.totalorder %s19, 1
      %p105 = por %p103, %p104
      %p106 = scmp.ne.s32.totalorder %s95, %s96
      %p107 = scmp.eq.s32.totalorder %s19, 0
      %p108 = por %p106, %p107
      %p109 = scmp.ne.s32.totalorder %s95, %s96
      %p110 = scmp.eq.s32.totalorder %s20, 1
      %p111 = por %p109, %p110
      %p113 = scmp.ne.s32.totalorder %s96, %s112
      %p114 = scmp.eq.s32.totalorder %s20, 0
      %p115 = por %p113, %p114
      %s116 = ssub.s32 %s14, %s21
      %p117 = scmp.eq.s32.totalorder %s116, 0
      %s119 = sadd.s32 %s118, 1
      %s120 = scalar_select %p117, %s118, %s119
      %p123 = pneg %p117
      %p124 = scmp.eq.s32.totalorder %s14, 1
      %p125 = por %p123, %p124
      %p126 = scmp.ne.s32.totalorder %s118, %s121
      %p127 = scmp.eq.s32.totalorder %s14, 0
      %p128 = por %p126, %p127
      %p129 = scmp.ne.s32.totalorder %s118, %s121
      %p130 = scmp.eq.s32.totalorder %s19, 1
      %p131 = por %p129, %p130
      %p132 = scmp.ne.s32.totalorder %s121, %s122
      %p133 = scmp.eq.s32.totalorder %s19, 0
      %p134 = por %p132, %p133
      %p135 = scmp.ne.s32.totalorder %s121, %s122
      %p136 = scmp.eq.s32.totalorder %s20, 1
      %p137 = por %p135, %p136
      %p139 = scmp.ne.s32.totalorder %s122, %s138
      %p140 = scmp.eq.s32.totalorder %s20, 0
      %p141 = por %p139, %p140
      %p142 = scmp.le.s32.totalorder 1, %s14
      %p143 = scmp.lt.s32.totalorder %s14, 3
      %p144 = pnand %p142, %p143
      %p145 = pneg %p144
      // Predicated region
      $region9: #{tpu_custom_call.1} parent=5 // pred_check
        _
      $region10: #{tpu_custom_call.1} parent=5 // pred_check_branch
        %147 = sbr.rel (%p144) target = $region12
      $region11: #{tpu_custom_call.1} parent=5 // pred_region
        %s148 = ssub.s32 %s14, 1
        // Predicated region
        $region13: #{tpu_custom_call.1} parent=11 // pred_check
          %p149 = pneg %p61
        $region14: #{tpu_custom_call.1} parent=11 // pred_check_branch
          %151 = sbr.rel (%p149) target = $region16
        $region15: #{tpu_custom_call.1} parent=11 // pred_region
          _
        $region16: #{tpu_custom_call.1} parent=11 // pred_fallthru
          _
        // Predicated region
        $region17: #{tpu_custom_call.1} parent=11 // pred_check
          %p152 = pneg %p82
        $region18: #{tpu_custom_call.1} parent=11 // pred_check_branch
          %154 = sbr.rel (%p152) target = $region20
        $region19: #{tpu_custom_call.1} parent=11 // pred_region
          _
        $region20: #{tpu_custom_call.1} parent=11 // pred_fallthru
          _
      $region12: #{tpu_custom_call.1} parent=5 // pred_fallthru
        _
      %p155 = scmp.lt.s32.totalorder %s14, 2
      // Predicated region
      $region21: #{tpu_custom_call.1} parent=5 // pred_check
        %p156 = pneg %p155
      $region22: #{tpu_custom_call.1} parent=5 // pred_check_branch
        %158 = sbr.rel (%p156) target = $region24
      $region23: #{tpu_custom_call.1} parent=5 // pred_region
        // Predicated region
        $region25: #{tpu_custom_call.1} parent=23 // pred_check
          %p159 = pneg %p34
        $region26: #{tpu_custom_call.1} parent=23 // pred_check_branch
          %161 = sbr.rel (%p159) target = $region28
        $region27: #{tpu_custom_call.1} parent=23 // pred_region
          %p162 = scmp.lt.s32.totalorder %s14, 1
          %s163 = scalar_select %p162, %s14, 1
          %s164 = smul.addr %s163, 2
          %s165 = smul.addr %s164, 8
          %s166 = scalar_lea.vmem %s0, %s165
        $region28: #{tpu_custom_call.1} parent=23 // pred_fallthru
          _
      $region24: #{tpu_custom_call.1} parent=5 // pred_fallthru
        _
      %p167 = scmp.le.s32.totalorder 1, %s14
      %p168 = scmp.lt.s32.totalorder %s14, 3
      %p169 = pnand %p167, %p168
      %p170 = pneg %p169
      // Predicated region
      $region29: #{tpu_custom_call.1} parent=5 // pred_check
        _
      $region30: #{tpu_custom_call.1} parent=5 // pred_check_branch
        %172 = sbr.rel (%p169) target = $region32
      $region31: #{tpu_custom_call.1} parent=5 // pred_region
        %s173 = ssub.s32 %s14, 1
        %p174 = scmp.lt.s32.totalorder %s19, 1
        %s175 = scalar_select %p174, %s19, 1
        %s176 = smul.addr %s175, 2
        %s177 = smul.addr %s176, 8
        %s178 = scalar_lea.vmem %s0, %s177
        %p179 = pneg %p40
        %p180 = pneg %p37
        %p181 = pneg %p61
        %p182 = pneg %p58
        %p183 = pneg %p82
        %p184 = pneg %p79
        %p185 = pneg %p108
        %p186 = pneg %p105
        %s187 = sand.u32 %s95, 1
        %s188 = scalar_lea.sflag [#allocation3], %s187
        %s189 = sand.u32 %s95, 1
        %s190 = smul.addr %s189, 8
        %s191 = scalar_lea.vmem [#allocation2], %s190
        %p192 = pneg %p134
        %p193 = pneg %p131
        %p194 = scmp.lt.s32.totalorder %s19, 1
        %s195 = scalar_select %p194, %s19, 1
        %s196 = smul.addr %s195, 8
        %s197 = scalar_lea.vmem %s4, %s196
        %p198 = scmp.lt.s32.totalorder %s19, 1
        %s199 = scalar_select %p198, %s19, 1
        %s200 = smul.addr %s199, 2
        %s201 = smul.addr %s200, 8
        %s202 = scalar_lea.vmem %s0, %s201
        %p203 = scmp.lt.s32.totalorder %s19, 1
        %s204 = scalar_select %p203, %s19, 1
        %s205 = smul.addr %s204, 8
        %s206 = scalar_lea.vmem %s4, %s205
        %v207 = vld [vmem:[%s1] sm:$0xff]
        %s208 = scalar_lea.vmem %s1, 8
        %v209 = vld [vmem:[%s208] sm:$0xff]
        %s210 = scalar_lea.vmem %s1, 16
        %v211 = vld [vmem:[%s210] sm:$0xff]
        %v212 = vld [vmem:[%s202] sm:$0xff]
        %v213 = vld [vmem:[%s202 + $0x8] sm:$0x1]
        %216 = vrot.lane.b32.xlu0 %v212, 1
        %v217 = vpop.permute.xlu0 %216
        %218 = vrot.lane.b32.xlu0 %v213, 1
        %v219 = vpop.permute.xlu0 %218
        %vm222 = vcmask 7168
        %v223 = vsel %vm222, 0.0, %v217
        %v224 = vsel %vm222, 0.0, %v219
        %vm225 = vcmask 138240
        %v226 = vsel %vm225, %v223, 0.0
        %v227 = vsel %vm225, %v224, 0.0
        %vm228 = vcmask 72704
        %v230 = vsel %vm228, %v207, 0
        %vm232 = vcmask 1040384
        %v234 = vsel %vm232, %v227, 0
        %236 = vmatprep.subr.mxu0 0.0
        %237 = vmatpush1.msra.mxu0 %v226
        %238 = vmatprep.subr.mxu0 0.0
        %239 = vmatpush1.msra.mxu0 %v234
        %240 = vmatprep.subr.mxu0 0.0
        %241 = vmatpush1.msra.mxu0 0.0
        %242 = vmatprep.subr.mxu0 0.0
        %243 = vmatpush1.msra.mxu0 0.0
        %244 = vmatprep.subr.mxu0 0.0
        %245 = vmatpush1.msra.mxu0 0.0
        %246 = vmatprep.subr.mxu0 0.0
        %247 = vmatpush1.msra.mxu0 0.0
        %248 = vmatprep.subr.mxu0 0.0
        %249 = vmatpush1.msra.mxu0 0.0
        %250 = vmatprep.subr.mxu0 0.0
        %251 = vmatpush1.msra.mxu0 0.0
        %252 = vmatprep.subr.mxu0 0.0
        %253 = vmatpush1.msra.mxu0 0.0
        %254 = vmatprep.subr.mxu0 0.0
        %255 = vmatpush1.msra.mxu0 0.0
        %256 = vmatprep.subr.mxu0 0.0
        %257 = vmatpush1.msra.mxu0 0.0
        %258 = vmatprep.subr.mxu0 0.0
        %259 = vmatpush1.msra.mxu0 0.0
        %260 = vmatprep.subr.mxu0 0.0
        %261 = vmatpush1.msra.mxu0 0.0
        %262 = vmatprep.subr.mxu0 0.0
        %263 = vmatpush1.msra.mxu0 0.0
        %264 = vmatprep.subr.mxu0 0.0
        %265 = vmatpush1.msra.mxu0 0.0
        %266 = vmatprep.subr.mxu0 0.0
        %267 = vmatpush1.msra.mxu0 0.0
        %268 = vmatprep.subr.mxu0 0.0
        %269 = vmatpush1.msra.mxu0 0.0
        %270 = vmatprep.subr.mxu0 0.0
        %271 = vmatpush1.msra.mxu0 0.0
        %272 = vmatprep.subr.mxu0 0.0
        %273 = vmatpush1.msra.mxu0 0.0
        %274 = vmatprep.subr.mxu0 0.0
        %275 = vmatpush1.msra.mxu0 0.0
        %276 = vmatprep.subr.mxu0 0.0
        %277 = vmatpush1.msra.mxu0 0.0
        %278 = vmatprep.subr.mxu0 0.0
        %279 = vmatpush1.msra.mxu0 0.0
        %280 = vmatprep.subr.mxu0 0.0
        %281 = vmatpush1.msra.mxu0 0.0
        %282 = vmatprep.subr.mxu0 0.0
        %283 = vmatpush1.msra.mxu0 0.0
        %284 = vmatprep.subr.mxu0 0.0
        %285 = vmatpush1.msra.mxu0 0.0
        %286 = vmatprep.subr.mxu0 0.0
        %287 = vmatpush1.msra.mxu0 0.0
        %288 = vmatprep.subr.mxu0 0.0
        %289 = vmatpush1.msra.mxu0 0.0
        %290 = vmatprep.subr.mxu0 0.0
        %291 = vmatpush1.msra.mxu0 0.0
        %292 = vmatprep.subr.mxu0 0.0
        %293 = vmatpush1.msra.mxu0 0.0
        %294 = vmatprep.subr.mxu0 0.0
        %295 = vmatpush1.msra.mxu0 0.0
        %296 = vmatprep.subr.mxu0 0.0
        %297 = vmatpush1.msra.mxu0 0.0
        %298 = vmatprep.subr.mxu0 0.0
        %299 = vmatpush1.msra.mxu0 0.0
        %300 = vmatprep.mubr.f32.mxu0 0.0
        %301 = vmatmul.mubr.f32.gmra.mrb[0].mxu0 %v230
        %v302 = vpop.f32.mrb[0].mxu0
        %v303 = vadd.f32 0.0, %v302
        %v304 = vpop.f32.mrb[0].mxu0
        %305 = vdwg.mxu0
        %v307 = vsel %vm228, %v209, 0
        %v309 = vsel %vm232, %v213, 0
        %311 = vmatprep.subr.mxu0 0.0
        %312 = vmatpush1.msra.mxu0 %v212
        %313 = vmatprep.subr.mxu0 0.0
        %314 = vmatpush1.msra.mxu0 %v309
        %315 = vmatprep.subr.mxu0 0.0
        %316 = vmatpush1.msra.mxu0 0.0
        %317 = vmatprep.subr.mxu0 0.0
        %318 = vmatpush1.msra.mxu0 0.0
        %319 = vmatprep.subr.mxu0 0.0
        %320 = vmatpush1.msra.mxu0 0.0
        %321 = vmatprep.subr.mxu0 0.0
        %322 = vmatpush1.msra.mxu0 0.0
        %323 = vmatprep.subr.mxu0 0.0
        %324 = vmatpush1.msra.mxu0 0.0
        %325 = vmatprep.subr.mxu0 0.0
        %326 = vmatpush1.msra.mxu0 0.0
        %327 = vmatprep.subr.mxu0 0.0
        %328 = vmatpush1.msra.mxu0 0.0
        %329 = vmatprep.subr.mxu0 0.0
        %330 = vmatpush1.msra.mxu0 0.0
        %331 = vmatprep.subr.mxu0 0.0
        %332 = vmatpush1.msra.mxu0 0.0
        %333 = vmatprep.subr.mxu0 0.0
        %334 = vmatpush1.msra.mxu0 0.0
        %335 = vmatprep.subr.mxu0 0.0
        %336 = vmatpush1.msra.mxu0 0.0
        %337 = vmatprep.subr.mxu0 0.0
        %338 = vmatpush1.msra.mxu0 0.0
        %339 = vmatprep.subr.mxu0 0.0
        %340 = vmatpush1.msra.mxu0 0.0
        %341 = vmatprep.subr.mxu0 0.0
        %342 = vmatpush1.msra.mxu0 0.0
        %343 = vmatprep.subr.mxu0 0.0
        %344 = vmatpush1.msra.mxu0 0.0
        %345 = vmatprep.subr.mxu0 0.0
        %346 = vmatpush1.msra.mxu0 0.0
        %347 = vmatprep.subr.mxu0 0.0
        %348 = vmatpush1.msra.mxu0 0.0
        %349 = vmatprep.subr.mxu0 0.0
        %350 = vmatpush1.msra.mxu0 0.0
        %351 = vmatprep.subr.mxu0 0.0
        %352 = vmatpush1.msra.mxu0 0.0
        %353 = vmatprep.subr.mxu0 0.0
        %354 = vmatpush1.msra.mxu0 0.0
        %355 = vmatprep.subr.mxu0 0.0
        %356 = vmatpush1.msra.mxu0 0.0
        %357 = vmatprep.subr.mxu0 0.0
        %358 = vmatpush1.msra.mxu0 0.0
        %359 = vmatprep.subr.mxu0 0.0
        %360 = vmatpush1.msra.mxu0 0.0
        %361 = vmatprep.subr.mxu0 0.0
        %362 = vmatpush1.msra.mxu0 0.0
        %363 = vmatprep.subr.mxu0 0.0
        %364 = vmatpush1.msra.mxu0 0.0
        %365 = vmatprep.subr.mxu0 0.0
        %366 = vmatpush1.msra.mxu0 0.0
        %367 = vmatprep.subr.mxu0 0.0
        %368 = vmatpush1.msra.mxu0 0.0
        %369 = vmatprep.subr.mxu0 0.0
        %370 = vmatpush1.msra.mxu0 0.0
        %371 = vmatprep.subr.mxu0 0.0
        %372 = vmatpush1.msra.mxu0 0.0
        %373 = vmatprep.subr.mxu0 0.0
        %374 = vmatpush1.msra.mxu0 0.0
        %375 = vmatprep.mubr.f32.mxu0 0.0
        %376 = vmatmul.mubr.f32.gmra.mrb[0].mxu0 %v307
        %v377 = vpop.f32.mrb[0].mxu0
        %v378 = vadd.f32 %v303, %v377
        %v379 = vpop.f32.mrb[0].mxu0
        %380 = vdwg.mxu0
        %382 = vrot.lane.b32.xlu0 %v226, 126
        %v383 = vpop.permute.xlu0 %382
        %384 = vrot.lane.b32.xlu0 %v227, 126
        %v385 = vpop.permute.xlu0 %384
        %v388 = vsel %vm228, %v211, 0
        %v390 = vsel %vm232, %v385, 0
        %392 = vmatprep.subr.mxu0 0.0
        %393 = vmatpush1.msra.mxu0 %v383
        %394 = vmatprep.subr.mxu0 0.0
        %395 = vmatpush1.msra.mxu0 %v390
        %396 = vmatprep.subr.mxu0 0.0
        %397 = vmatpush1.msra.mxu0 0.0
        %398 = vmatprep.subr.mxu0 0.0
        %399 = vmatpush1.msra.mxu0 0.0
        %400 = vmatprep.subr.mxu0 0.0
        %401 = vmatpush1.msra.mxu0 0.0
        %402 = vmatprep.subr.mxu0 0.0
        %403 = vmatpush1.msra.mxu0 0.0
        %404 = vmatprep.subr.mxu0 0.0
        %405 = vmatpush1.msra.mxu0 0.0
        %406 = vmatprep.subr.mxu0 0.0
        %407 = vmatpush1.msra.mxu0 0.0
        %408 = vmatprep.subr.mxu0 0.0
        %409 = vmatpush1.msra.mxu0 0.0
        %410 = vmatprep.subr.mxu0 0.0
        %411 = vmatpush1.msra.mxu0 0.0
        %412 = vmatprep.subr.mxu0 0.0
        %413 = vmatpush1.msra.mxu0 0.0
        %414 = vmatprep.subr.mxu0 0.0
        %415 = vmatpush1.msra.mxu0 0.0
        %416 = vmatprep.subr.mxu0 0.0
        %417 = vmatpush1.msra.mxu0 0.0
        %418 = vmatprep.subr.mxu0 0.0
        %419 = vmatpush1.msra.mxu0 0.0
        %420 = vmatprep.subr.mxu0 0.0
        %421 = vmatpush1.msra.mxu0 0.0
        %422 = vmatprep.subr.mxu0 0.0
        %423 = vmatpush1.msra.mxu0 0.0
        %424 = vmatprep.subr.mxu0 0.0
        %425 = vmatpush1.msra.mxu0 0.0
        %426 = vmatprep.subr.mxu0 0.0
        %427 = vmatpush1.msra.mxu0 0.0
        %428 = vmatprep.subr.mxu0 0.0
        %429 = vmatpush1.msra.mxu0 0.0
        %430 = vmatprep.subr.mxu0 0.0
        %431 = vmatpush1.msra.mxu0 0.0
        %432 = vmatprep.subr.mxu0 0.0
        %433 = vmatpush1.msra.mxu0 0.0
        %434 = vmatprep.subr.mxu0 0.0
        %435 = vmatpush1.msra.mxu0 0.0
        %436 = vmatprep.subr.mxu0 0.0
        %437 = vmatpush1.msra.mxu0 0.0
        %438 = vmatprep.subr.mxu0 0.0
        %439 = vmatpush1.msra.mxu0 0.0
        %440 = vmatprep.subr.mxu0 0.0
        %441 = vmatpush1.msra.mxu0 0.0
        %442 = vmatprep.subr.mxu0 0.0
        %443 = vmatpush1.msra.mxu0 0.0
        %444 = vmatprep.subr.mxu0 0.0
        %445 = vmatpush1.msra.mxu0 0.0
        %446 = vmatprep.subr.mxu0 0.0
        %447 = vmatpush1.msra.mxu0 0.0
        %448 = vmatprep.subr.mxu0 0.0
        %449 = vmatpush1.msra.mxu0 0.0
        %450 = vmatprep.subr.mxu0 0.0
        %451 = vmatpush1.msra.mxu0 0.0
        %452 = vmatprep.subr.mxu0 0.0
        %453 = vmatpush1.msra.mxu0 0.0
        %454 = vmatprep.subr.mxu0 0.0
        %455 = vmatpush1.msra.mxu0 0.0
        %456 = vmatprep.mubr.f32.mxu0 0.0
        %457 = vmatmul.mubr.f32.gmra.mrb[0].mxu0 %v388
        %v458 = vpop.f32.mrb[0].mxu0
        %v459 = vadd.f32 0.0, %v458
        %v460 = vpop.f32.mrb[0].mxu0
        %461 = vdwg.mxu0
        %v462 = vadd.f32 %v378, %v459
        %v463 = vld [vmem:[%s2] sm:$0xff]
        %465 = vset.pattern.permute.xlu0 0
        %466 = vperm.xlu0 %465, %v463
        %v467 = vpop.permute.xlu0 %466
        %v469 = vadd.f32 %v462, %v467
        %vm470 = vcmask 130048
        %471 = vst.msk [vmem:[%s191] sm:$0xff] %vm470, %v469
        %v472 = vsel %vm470, %v469, 0.0
        %473 = vadd.xlane.f32.xlu0 %v472
        %v474 = vpop.xlane.xlu0 %473
        %v475 = vadd.f32 %v474, 0.0
        %v476 = vmul.f32 %v469, %v469
        %v477 = vsel %vm470, %v476, 0.0
        %478 = vadd.xlane.f32.xlu0 %v477
        %v479 = vpop.xlane.xlu0 %478
        %v480 = vadd.f32 %v479, 0.0
        %v481 = vsel %vm222, %v475, %v480
        %vm482 = vcmask 15360
        %483 = vst.msk [vmem:[%s206] sm:$0xff] %vm482, %v481
        %s484 = sand.u32 %s95, 1
        %s485 = scalar_lea.sflag [#allocation3], %s484
        %s486 = sand.u32 %s95, 1
        %s487 = smul.addr %s486, 8
        %s488 = scalar_lea.vmem [#allocation2], %s487
        %p489 = scmp.lt.s32.totalorder %s19, 1
        %s490 = scalar_select %p489, %s19, 1
        %s491 = smul.addr %s490, 8
        %s492 = scalar_lea.vmem %s4, %s491
        // Predicated region
        $region33: #{tpu_custom_call.1} parent=31 // pred_check
          %p493 = pneg %p105
        $region34: #{tpu_custom_call.1} parent=31 // pred_check_branch
          %495 = sbr.rel (%p493) target = $region36
        $region35: #{tpu_custom_call.1} parent=31 // pred_region
          %s497 = ssub.s32 128, 128
          %498 = vsyncadd %s485, %s497
          %s499 = smul.addr %s19, 128
          %s500 = scalar_lea.hbm %s3, %s499
          %s502 = sshll.u32 %s488, 4
          %s503 = int_to_ptr.vmem [resolvable:$true] %s502
          %505 = dma.vmem_to_hbm [thread:$0]  %s503, 128, %s500, %s485
        $region36: #{tpu_custom_call.1} parent=31 // pred_fallthru
          _
        // Predicated region
        $region37: #{tpu_custom_call.1} parent=31 // pred_check
          %p506 = pneg %p131
        $region38: #{tpu_custom_call.1} parent=31 // pred_check_branch
          %508 = sbr.rel (%p506) target = $region40
        $region39: #{tpu_custom_call.1} parent=31 // pred_region
          _
        $region40: #{tpu_custom_call.1} parent=31 // pred_fallthru
          _
      $region32: #{tpu_custom_call.1} parent=5 // pred_fallthru
        _
      %p509 = scmp.le.s32.totalorder 2, %s14
      // Predicated region
      $region41: #{tpu_custom_call.1} parent=5 // pred_check
        %p510 = pneg %p509
      $region42: #{tpu_custom_call.1} parent=5 // pred_check_branch
        %512 = sbr.rel (%p510) target = $region44
      $region43: #{tpu_custom_call.1} parent=5 // pred_region
        %s513 = ssub.s32 %s14, 2
        // Predicated region
        $region45: #{tpu_custom_call.1} parent=43 // pred_check
          %p514 = pneg %p111
        $region46: #{tpu_custom_call.1} parent=43 // pred_check_branch
          %516 = sbr.rel (%p514) target = $region48
        $region47: #{tpu_custom_call.1} parent=43 // pred_region
          %s517 = sand.u32 %s96, 1
          %s518 = scalar_lea.sflag [#allocation3], %s517
          %s519 = sand.u32 %s96, 1
          %s520 = smul.addr %s519, 8
          %s521 = scalar_lea.vmem [#allocation2], %s520
          %522 = dma.done %s518, 128
        $region48: #{tpu_custom_call.1} parent=43 // pred_fallthru
          _
        // Predicated region
        $region49: #{tpu_custom_call.1} parent=43 // pred_check
          %p523 = pneg %p137
        $region50: #{tpu_custom_call.1} parent=43 // pred_check_branch
          %525 = sbr.rel (%p523) target = $region52
        $region51: #{tpu_custom_call.1} parent=43 // pred_region
          %p526 = scmp.lt.s32.totalorder %s20, 1
          %s527 = scalar_select %p526, %s20, 1
          %s528 = smul.addr %s527, 8
          %s529 = scalar_lea.vmem %s4, %s528
        $region52: #{tpu_custom_call.1} parent=43 // pred_fallthru
          _
      $region44: #{tpu_custom_call.1} parent=5 // pred_fallthru
        _
    $region6: #{tpu_custom_call.1} parent=1 // loop_footer
      %s18 = sadd.s32 1, %s14
    $region7: #{tpu_custom_call.1} parent=1 // loop_footer_branch
      %13 = sbr.rel target = $region3
    $region8: #{tpu_custom_call.1} parent=1 // loop_exit
      _
    %530 = vsyncpa [#allocation3], 1
    %s531 = scalar_lea.sflag [#allocation3], 1
    %532 = vsyncpa %s531, 1

</llo_original>
